<compile_context>
chip_gen: v5e
topology: v5e:2x2
jax: 0.10.0
libtpu: 0.0.40
codegen_flags: <defaults>
</compile_context>

<pallas_src>
import math

import jax
import jax.numpy as jnp
from jax import lax
from jax.experimental import pallas as pl
from jax.experimental.pallas import tpu as pltpu

LN_EPS = 1e-5  # PyTorch nn.LayerNorm default
LANE = 128


def _round_up(x, m):
    return ((x + m - 1) // m) * m


def _gelu_exact(x):
    # PyTorch nn.GELU() default is the exact erf formulation.
    # TODO(synk): the tanh approximation would route through the EUP (free bundle
    # slot) but changes numerics vs. the reference module, so exact erf is kept.
    return 0.5 * x * (1.0 + lax.erf(x * (1.0 / math.sqrt(2.0))))


# ---------------------------------------------------------------------------
# Kernel: Linear -> LayerNorm -> GELU -> folded-head Linear
# ---------------------------------------------------------------------------
def adaptive_resonance_kernel(x_ref, wp_ref, bp_ref, g_ref, beta_ref,
                              wf_ref, bf_ref, o_ref):
    # ---- input projection: Linear(D_in, D_in), f32 accumulation on MXU ----
    h = jnp.dot(x_ref[...], wp_ref[...], preferred_element_type=jnp.float32)
    h = h + bp_ref[...]

    # ---- LayerNorm over last dim ----
    mu = jnp.mean(h, axis=-1, keepdims=True)
    var = jnp.mean(jnp.square(h - mu), axis=-1, keepdims=True)
    h = (h - mu) * lax.rsqrt(var + LN_EPS)
    h = h * g_ref[...] + beta_ref[...]

    # ---- GELU (exact) ----
    h = _gelu_exact(h)

    # ---- folded heads: single (tm, d_in) x (d_in, d_out_padded) matmul ----
    h = h.astype(wf_ref.dtype)  # keep MXU operands in the compute dtype (e.g. bf16)
    out = jnp.dot(h, wf_ref[...], preferred_element_type=jnp.float32) + bf_ref[...]
    o_ref[...] = out.astype(o_ref.dtype)


def _vmem_bytes_estimate(tm, d_in, d_out_p, compute_dtype, out_dtype):
    itm = jnp.dtype(compute_dtype).itemsize
    ito = jnp.dtype(out_dtype).itemsize
    tiles = 2 * (tm * d_in * itm + tm * d_out_p * ito)            # double-buffered x / out tiles
    weights = 2 * (d_in * d_in * itm + d_in * d_out_p * itm       # resident matmul weights
                   + (3 * d_in + d_out_p) * 4)                    # f32 biases / LN params
    return tiles + weights


def adaptive_resonance_forward(x, folded, *, tm=256, out_dtype=None):
    """x: (B, d_in). `folded` comes from fold_inference_params()."""
    B, d_in = x.shape
    d_out_p = folded["w_fold"].shape[1]          # lane-padded output width (mult of 128)
    d_out = folded["d_out"]                      # true output width
    compute_dtype = folded["w_fold"].dtype
    out_dtype = out_dtype if out_dtype is not None else x.dtype

    x = x.astype(compute_dtype)

    # Batch tiling: tm up to 256 rows, pad batch with zero rows (harmless through
    # LN/GELU) and slice the result back.
    b_pad = _round_up(B, 8)
    tm = min(tm, b_pad)
    grid = pl.cdiv(b_pad, tm)
    total = grid * tm
    if total != B:
        x = jnp.pad(x, ((0, total - B), (0, 0)))

    flops = int(2 * total * d_in * (d_in + d_out_p) + 12 * total * d_in)
    bytes_accessed = int(
        total * d_in * jnp.dtype(compute_dtype).itemsize
        + (d_in * d_in + d_in * d_out_p) * jnp.dtype(compute_dtype).itemsize
        + (3 * d_in + d_out_p) * 4
        + total * d_out_p * jnp.dtype(out_dtype).itemsize)
    cost = pl.CostEstimate(flops=flops,
                           transcendentals=int(total * d_in),
                           bytes_accessed=bytes_accessed)

    vmem_est = _vmem_bytes_estimate(tm, d_in, d_out_p, compute_dtype, out_dtype)
    vmem_limit = int(max(16 << 20, min(64 << 20, 2 * vmem_est)))

    out = pl.pallas_call(
        adaptive_resonance_kernel,
        out_shape=jax.ShapeDtypeStruct((total, d_out_p), out_dtype),
        grid_spec=pltpu.PrefetchScalarGridSpec(
            num_scalar_prefetch=0,
            grid=(grid,),
            in_specs=[
                pl.BlockSpec((tm, d_in), lambda i: (i, 0)),        # x tile
                pl.BlockSpec((d_in, d_in), lambda i: (0, 0)),      # Wp (resident)
                pl.BlockSpec((1, d_in), lambda i: (0, 0)),         # bp
                pl.BlockSpec((1, d_in), lambda i: (0, 0)),         # LN gamma
                pl.BlockSpec((1, d_in), lambda i: (0, 0)),         # LN beta
                pl.BlockSpec((d_in, d_out_p), lambda i: (0, 0)),   # folded head weight
                pl.BlockSpec((1, d_out_p), lambda i: (0, 0)),      # folded head bias
            ],
            out_specs=pl.BlockSpec((tm, d_out_p), lambda i: (i, 0)),
        ),
        compiler_params=pltpu.CompilerParams(
            dimension_semantics=("parallel",),
            vmem_limit_bytes=vmem_limit),
        cost_estimate=cost,
    )(x, folded["wp"], folded["bp"], folded["gamma"], folded["beta"],
      folded["w_fold"], folded["b_fold"])

    return out[:B, :d_out]


# ---------------------------------------------------------------------------
# Parameter construction (deterministic, in-script) + inference-time folding
# ---------------------------------------------------------------------------
def _frequency_bands(min_freq, max_freq, num_heads):
    # torch.logspace(log2(min), log2(max), H, base=2).int()  (truncation)
    exps = jnp.linspace(math.log2(min_freq), math.log2(max_freq), num_heads)
    return [int(f) for f in (2.0 ** exps)]


def _make_fourier_head_effective(key, input_dim, output_dim, num_freq):
    """Fold (linear -> sinusoidal basis eval) into one effective linear."""
    k1, k2 = jax.random.split(key)
    bound = 1.0 / math.sqrt(input_dim)
    w_raw = jax.random.uniform(k1, (input_dim, 2 * num_freq), jnp.float32,
                               minval=-bound, maxval=bound)
    b_raw = jax.random.uniform(k2, (2 * num_freq,), jnp.float32,
                               minval=-bound, maxval=bound)
    j = jnp.arange(output_dim, dtype=jnp.float32)
    m = -1.0 + (2.0 * j + 1.0) / output_dim                   # bin centers in (-1, 1)
    k = jnp.arange(1, num_freq + 1, dtype=jnp.float32)
    cos_b = jnp.cos(jnp.pi * k[:, None] * m[None, :])         # (F, D_out)
    sin_b = jnp.sin(jnp.pi * k[:, None] * m[None, :])         # (F, D_out)
    basis = jnp.concatenate([cos_b, sin_b], axis=0)           # (2F, D_out)
    return w_raw @ basis, b_raw @ basis                       # (D_in, D_out), (D_out,)


def make_params(key, input_dim, output_dim, min_freq=4, max_freq=64, num_heads=8):
    keys = jax.random.split(key, 3 + num_heads)
    bound = 1.0 / math.sqrt(input_dim)
    wp = jax.random.uniform(keys[0], (input_dim, input_dim), jnp.float32,
                            minval=-bound, maxval=bound)
    bp = jax.random.uniform(keys[1], (1, input_dim), jnp.float32,
                            minval=-bound, maxval=bound)
    gamma = jnp.ones((1, input_dim), jnp.float32)              # LayerNorm init
    beta = jnp.zeros((1, input_dim), jnp.float32)

    bands = _frequency_bands(min_freq, max_freq, num_heads)
    wh, bh = [], []
    for h, freq in enumerate(bands):
        w_eff, b_eff = _make_fourier_head_effective(keys[3 + h], input_dim,
                                                    output_dim, freq)
        wh.append(w_eff)
        bh.append(b_eff.reshape(1, output_dim))
    wh = jnp.stack(wh, axis=0)                                 # (H, D_in, D_out)
    bh = jnp.stack(bh, axis=0)                                 # (H, 1, D_out)

    attn = jnp.zeros((1, num_heads), jnp.float32)              # torch.zeros init
    return dict(wp=wp, bp=bp, gamma=gamma, beta=beta, wh=wh, bh=bh, attn=attn)


def fold_inference_params(params, compute_dtype=jnp.float32):
    """Inference-time folding (exact at eval: softmax(attn) is data-independent,
    dropout is identity).  Folds softmax(frequency_attention) into a single
    effective head weight/bias and zero-pads the output dim to a lane-dense
    multiple of 128."""
    w = jax.nn.softmax(params["attn"][0])                      # (H,)
    w_fold = jnp.einsum("h,hde->de", w, params["wh"])          # (D_in, D_out)
    b_fold = jnp.einsum("h,hoe->oe", w, params["bh"])          # (1, D_out)
    d_out = w_fold.shape[1]
    d_out_p = _round_up(d_out, LANE)
    pad = d_out_p - d_out
    if pad:
        w_fold = jnp.pad(w_fold, ((0, 0), (0, pad)))
        b_fold = jnp.pad(b_fold, ((0, 0), (0, pad)))
    return dict(
        wp=params["wp"].astype(compute_dtype),
        bp=params["bp"].astype(jnp.float32),
        gamma=params["gamma"].astype(jnp.float32),
        beta=params["beta"].astype(jnp.float32),
        w_fold=w_fold.astype(compute_dtype),
        b_fold=b_fold.astype(jnp.float32),
        d_out=d_out,
    )


# ---------------------------------------------------------------------------
# Pure-JAX reference (unfolded per-head math, same as the PyTorch forward)
# ---------------------------------------------------------------------------
def reference_forward(x, params):
    h = x @ params["wp"] + params["bp"][0]
    mu = h.mean(-1, keepdims=True)
    var = ((h - mu) ** 2).mean(-1, keepdims=True)
    h = (h - mu) / jnp.sqrt(var + LN_EPS)
    h = h * params["gamma"][0] + params["beta"][0]
    h = 0.5 * h * (1.0 + jax.scipy.special.erf(h / jnp.sqrt(2.0)))
    w = jax.nn.softmax(params["attn"][0])
    head_out = jnp.einsum("bd,hde->hbe", h, params["wh"]) + params["bh"][:, 0][:, None, :]
    return (head_out * w[:, None, None]).sum(axis=0)


if __name__ == "__main__":
    batch, input_dim, output_dim, num_heads = 64, 32, 32, 8

    key = jax.random.PRNGKey(0)
    kx, kp = jax.random.split(key)
    x = jax.random.normal(kx, (batch, input_dim), jnp.float32)
    params = make_params(kp, input_dim, output_dim, num_heads=num_heads)
    ref = reference_forward(x, params)

    # float32 path: tight correctness check against the unfolded reference.
    folded_f32 = fold_inference_params(params, jnp.float32)
    out = adaptive_resonance_forward(x, folded_f32)
    out = jax.block_until_ready(out)
    assert out.shape == (batch, output_dim)
    assert jnp.allclose(out, ref, atol=1e-4, rtol=1e-4), "f32 kernel mismatch vs reference"

    # bfloat16 path: native MXU input dtype (perf path), loose sanity check.
    folded_bf16 = fold_inference_params(params, jnp.bfloat16)
    out_bf16 = adaptive_resonance_forward(x, folded_bf16, out_dtype=jnp.float32)
    out_bf16 = jax.block_until_ready(out_bf16)
    assert out_bf16.shape == (batch, output_dim)
    assert bool(jnp.all(jnp.isfinite(out_bf16)))
    assert float(jnp.max(jnp.abs(out_bf16 - ref))) < 0.25, "bf16 kernel deviates too much"

    print("KERNEL_OK")
</pallas_src>

<mosaic_0001>
module attributes {stable_mosaic.version = 11 : i64} {
  func.func @adaptive_resonance_kernel(%arg0: i32, %arg1: memref<64x32xf32, #tpu.memory_space<vmem>>, %arg2: memref<32x32xf32, #tpu.memory_space<vmem>>, %arg3: memref<1x32xf32, #tpu.memory_space<vmem>>, %arg4: memref<1x32xf32, #tpu.memory_space<vmem>>, %arg5: memref<1x32xf32, #tpu.memory_space<vmem>>, %arg6: memref<32x128xf32, #tpu.memory_space<vmem>>, %arg7: memref<1x128xf32, #tpu.memory_space<vmem>>, %arg8: memref<64x128xf32, #tpu.memory_space<vmem>>) attributes {dimension_semantics = [#tpu.dimension_semantics<parallel>], iteration_bounds = array<i64: 1>, scalar_prefetch = 0 : i64, scratch_operands = 0 : i64, tpu.core_type = #tpu.core_type<tc>, window_params = [{transform_indices = @transform_0, window_bounds = array<i64: 64, 32>}, {pipeline_mode = #tpu.pipeline_mode<synchronous>, transform_indices = @transform_1, window_bounds = array<i64: 32, 32>}, {pipeline_mode = #tpu.pipeline_mode<synchronous>, transform_indices = @transform_2, window_bounds = array<i64: 1, 32>}, {pipeline_mode = #tpu.pipeline_mode<synchronous>, transform_indices = @transform_3, window_bounds = array<i64: 1, 32>}, {pipeline_mode = #tpu.pipeline_mode<synchronous>, transform_indices = @transform_4, window_bounds = array<i64: 1, 32>}, {pipeline_mode = #tpu.pipeline_mode<synchronous>, transform_indices = @transform_5, window_bounds = array<i64: 32, 128>}, {pipeline_mode = #tpu.pipeline_mode<synchronous>, transform_indices = @transform_6, window_bounds = array<i64: 1, 128>}, {transform_indices = @transform_7, window_bounds = array<i64: 64, 128>}]} {
    %c0 = arith.constant 0 : index
    %c0_0 = arith.constant 0 : index
    %0 = vector.load %arg1[%c0, %c0_0] : memref<64x32xf32, #tpu.memory_space<vmem>>, vector<64x32xf32>
    %c0_1 = arith.constant 0 : index
    %c0_2 = arith.constant 0 : index
    %1 = vector.load %arg2[%c0_1, %c0_2] : memref<32x32xf32, #tpu.memory_space<vmem>>, vector<32x32xf32>
    %cst = arith.constant dense<0.000000e+00> : vector<64x32xf32>
    %2 = tpu.matmul %0, %1, %cst {dimension_numbers = #tpu.dot_dimension_numbers<[1], [0], [0], [1], [0, 0, 1, 1], [], []>} : vector<64x32xf32>, vector<32x32xf32>, vector<64x32xf32> -> vector<64x32xf32>
    %c0_3 = arith.constant 0 : index
    %c0_4 = arith.constant 0 : index
    %3 = vector.load %arg3[%c0_3, %c0_4] : memref<1x32xf32, #tpu.memory_space<vmem>>, vector<1x32xf32>
    %4 = vector.broadcast %3 : vector<1x32xf32> to vector<64x32xf32>
    %5 = arith.addf %2, %4 : vector<64x32xf32>
    %cst_5 = arith.constant dense<0.000000e+00> : vector<64xf32>
    %6 = vector.multi_reduction <add>, %5, %cst_5 [1] : vector<64x32xf32> to vector<64xf32>
    %7 = vector.shape_cast %6 : vector<64xf32> to vector<64x1xf32>
    %cst_6 = arith.constant 3.200000e+01 : f32
    %8 = vector.broadcast %cst_6 : f32 to vector<64x1xf32>
    %9 = arith.divf %7, %8 : vector<64x1xf32>
    %10 = vector.broadcast %9 : vector<64x1xf32> to vector<64x32xf32>
    %11 = arith.subf %5, %10 : vector<64x32xf32>
    %12 = arith.mulf %11, %11 : vector<64x32xf32>
    %cst_7 = arith.constant dense<0.000000e+00> : vector<64xf32>
    %13 = vector.multi_reduction <add>, %12, %cst_7 [1] : vector<64x32xf32> to vector<64xf32>
    %14 = vector.shape_cast %13 : vector<64xf32> to vector<64x1xf32>
    %cst_8 = arith.constant 3.200000e+01 : f32
    %15 = vector.broadcast %cst_8 : f32 to vector<64x1xf32>
    %16 = arith.divf %14, %15 : vector<64x1xf32>
    %17 = vector.broadcast %9 : vector<64x1xf32> to vector<64x32xf32>
    %18 = arith.subf %5, %17 : vector<64x32xf32>
    %cst_9 = arith.constant 9.99999974E-6 : f32
    %19 = vector.broadcast %cst_9 : f32 to vector<64x1xf32>
    %20 = arith.addf %16, %19 : vector<64x1xf32>
    %21 = math.rsqrt %20 : vector<64x1xf32>
    %22 = vector.broadcast %21 : vector<64x1xf32> to vector<64x32xf32>
    %23 = arith.mulf %18, %22 : vector<64x32xf32>
    %c0_10 = arith.constant 0 : index
    %c0_11 = arith.constant 0 : index
    %24 = vector.load %arg4[%c0_10, %c0_11] : memref<1x32xf32, #tpu.memory_space<vmem>>, vector<1x32xf32>
    %25 = vector.broadcast %24 : vector<1x32xf32> to vector<64x32xf32>
    %26 = arith.mulf %23, %25 : vector<64x32xf32>
    %c0_12 = arith.constant 0 : index
    %c0_13 = arith.constant 0 : index
    %27 = vector.load %arg5[%c0_12, %c0_13] : memref<1x32xf32, #tpu.memory_space<vmem>>, vector<1x32xf32>
    %28 = vector.broadcast %27 : vector<1x32xf32> to vector<64x32xf32>
    %29 = arith.addf %26, %28 : vector<64x32xf32>
    %cst_14 = arith.constant 5.000000e-01 : f32
    %30 = vector.broadcast %cst_14 : f32 to vector<64x32xf32>
    %31 = arith.mulf %30, %29 : vector<64x32xf32>
    %cst_15 = arith.constant 0.707106769 : f32
    %32 = vector.broadcast %cst_15 : f32 to vector<64x32xf32>
    %33 = arith.mulf %29, %32 : vector<64x32xf32>
    %34 = math.erf %33 : vector<64x32xf32>
    %cst_16 = arith.constant 1.000000e+00 : f32
    %35 = vector.broadcast %cst_16 : f32 to vector<64x32xf32>
    %36 = arith.addf %35, %34 : vector<64x32xf32>
    %37 = arith.mulf %31, %36 : vector<64x32xf32>
    %c0_17 = arith.constant 0 : index
    %c0_18 = arith.constant 0 : index
    %38 = vector.load %arg6[%c0_17, %c0_18] : memref<32x128xf32, #tpu.memory_space<vmem>>, vector<32x128xf32>
    %cst_19 = arith.constant dense<0.000000e+00> : vector<64x128xf32>
    %39 = tpu.matmul %37, %38, %cst_19 {dimension_numbers = #tpu.dot_dimension_numbers<[1], [0], [0], [1], [0, 0, 1, 1], [], []>} : vector<64x32xf32>, vector<32x128xf32>, vector<64x128xf32> -> vector<64x128xf32>
    %c0_20 = arith.constant 0 : index
    %c0_21 = arith.constant 0 : index
    %40 = vector.load %arg7[%c0_20, %c0_21] : memref<1x128xf32, #tpu.memory_space<vmem>>, vector<1x128xf32>
    %41 = vector.broadcast %40 : vector<1x128xf32> to vector<64x128xf32>
    %42 = arith.addf %39, %41 : vector<64x128xf32>
    %c0_22 = arith.constant 0 : index
    %c0_23 = arith.constant 0 : index
    %43 = vector.load %arg8[%c0_22, %c0_23] : memref<64x128xf32, #tpu.memory_space<vmem>>, vector<64x128xf32>
    tpu.vector_store %arg8[%c0_22, %c0_23], %42 {strides = array<i32>} : memref<64x128xf32, #tpu.memory_space<vmem>>, vector<64x128xf32>,
    return
  }
  func.func @transform_0(%arg0: i32) -> (i32, i32) {
    %c0_i32 = arith.constant 0 : i32
    %c0_i32_0 = arith.constant 0 : i32
    return %arg0, %c0_i32 : i32, i32
  }
  func.func @transform_1(%arg0: i32) -> (i32, i32) {
    %c0_i32 = arith.constant 0 : i32
    %c0_i32_0 = arith.constant 0 : i32
    %c0_i32_1 = arith.constant 0 : i32
    return %c0_i32, %c0_i32_0 : i32, i32
  }
  func.func @transform_2(%arg0: i32) -> (i32, i32) {
    %c0_i32 = arith.constant 0 : i32
    %c0_i32_0 = arith.constant 0 : i32
    %c0_i32_1 = arith.constant 0 : i32
    return %c0_i32, %c0_i32_0 : i32, i32
  }
  func.func @transform_3(%arg0: i32) -> (i32, i32) {
    %c0_i32 = arith.constant 0 : i32
    %c0_i32_0 = arith.constant 0 : i32
    %c0_i32_1 = arith.constant 0 : i32
    return %c0_i32, %c0_i32_0 : i32, i32
  }
  func.func @transform_4(%arg0: i32) -> (i32, i32) {
    %c0_i32 = arith.constant 0 : i32
    %c0_i32_0 = arith.constant 0 : i32
    %c0_i32_1 = arith.constant 0 : i32
    return %c0_i32, %c0_i32_0 : i32, i32
  }
  func.func @transform_5(%arg0: i32) -> (i32, i32) {
    %c0_i32 = arith.constant 0 : i32
    %c0_i32_0 = arith.constant 0 : i32
    %c0_i32_1 = arith.constant 0 : i32
    return %c0_i32, %c0_i32_0 : i32, i32
  }
  func.func @transform_6(%arg0: i32) -> (i32, i32) {
    %c0_i32 = arith.constant 0 : i32
    %c0_i32_0 = arith.constant 0 : i32
    %c0_i32_1 = arith.constant 0 : i32
    return %c0_i32, %c0_i32_0 : i32, i32
  }
  func.func @transform_7(%arg0: i32) -> (i32, i32) {
    %c0_i32 = arith.constant 0 : i32
    %c0_i32_0 = arith.constant 0 : i32
    return %arg0, %c0_i32 : i32, i32
  }
}

</mosaic_0001>

<llo_original>
// kernel: tpu_custom_call.1
$region0: #{tpu_custom_call.1}
  #allocation0 [shape = 'u32[]', space=smem, size = 0x4, offset = 0x4, fixed_abs, tag = 'smem constant byte address 0x4 - core index']
  #allocation1 [shape = 'u32[72,128]{1,0:T(1,128)}', space=vmem, size = 0x9000, scoped, tag = 'internal scratch']
  %s0 = inlined_call_operand.vmem [shape: f32[64,32], index: 0, kind: input, shape index: {}]
  %s1 = inlined_call_operand.vmem [shape: f32[32,32], index: 1, kind: input, shape index: {}]
  %s2 = inlined_call_operand.vmem [shape: f32[1,32], index: 2, kind: input, shape index: {}]
  %s3 = inlined_call_operand.vmem [shape: f32[1,32], index: 3, kind: input, shape index: {}]
  %s4 = inlined_call_operand.vmem [shape: f32[1,32], index: 4, kind: input, shape index: {}]
  %s5 = inlined_call_operand.vmem [shape: f32[32,128], index: 5, kind: input, shape index: {}]
  %s6 = inlined_call_operand.vmem [shape: f32[1,128], index: 6, kind: input, shape index: {}]
  %s7 = inlined_call_operand.hbm [shape: f32[64,128], index: 7, kind: output, shape index: {}]
  %s8 = sld [smem:[#allocation0]]
  $region38: #{tpu_custom_call.1} parent=0
    _
  %s10 = ssub.s32 1, %s8
  %s11 = scalar_select 0, %s10, %s8
  $region1: #{tpu_custom_call.1} parent=0
    #allocation2 [shape = 'u8[32768]{0}', space=vmem, size = 0x8000, scoped, tag = 'output window, operand 0, single buffered']
    #allocation3 [shape = 's32[1]{0}', space=sflag, size = 0x4, scoped, tag = 'scoped memory for tpu_custom_call.1']
    %12 = vsyncpa [#allocation3], 0
    // Predicated region
    $region2: #{tpu_custom_call.1} parent=1 // pred_check
      _
    $region3: #{tpu_custom_call.1} parent=1 // pred_check_branch
      %14 = sbr.rel (0) target = $region5
    $region4: #{tpu_custom_call.1} parent=1 // pred_region
      _
    $region5: #{tpu_custom_call.1} parent=1 // pred_fallthru
      _
    // Predicated region
    $region6: #{tpu_custom_call.1} parent=1 // pred_check
      _
    $region7: #{tpu_custom_call.1} parent=1 // pred_check_branch
      %16 = sbr.rel (0) target = $region9
    $region8: #{tpu_custom_call.1} parent=1 // pred_region
      _
    $region9: #{tpu_custom_call.1} parent=1 // pred_fallthru
      _
    // Predicated region
    $region10: #{tpu_custom_call.1} parent=1 // pred_check
      _
    $region11: #{tpu_custom_call.1} parent=1 // pred_check_branch
      %18 = sbr.rel (0) target = $region13
    $region12: #{tpu_custom_call.1} parent=1 // pred_region
      _
    $region13: #{tpu_custom_call.1} parent=1 // pred_fallthru
      _
    // Predicated region
    $region14: #{tpu_custom_call.1} parent=1 // pred_check
      _
    $region15: #{tpu_custom_call.1} parent=1 // pred_check_branch
      %20 = sbr.rel (0) target = $region17
    $region16: #{tpu_custom_call.1} parent=1 // pred_region
      _
    $region17: #{tpu_custom_call.1} parent=1 // pred_fallthru
      _
    // Predicated region
    $region18: #{tpu_custom_call.1} parent=1 // pred_check
      _
    $region19: #{tpu_custom_call.1} parent=1 // pred_check_branch
      %22 = sbr.rel (0) target = $region21
    $region20: #{tpu_custom_call.1} parent=1 // pred_region
      _
    $region21: #{tpu_custom_call.1} parent=1 // pred_fallthru
      _
    // Predicated region
    $region22: #{tpu_custom_call.1} parent=1 // pred_check
      _
    $region23: #{tpu_custom_call.1} parent=1 // pred_check_branch
      %24 = sbr.rel (0) target = $region25
    $region24: #{tpu_custom_call.1} parent=1 // pred_region
      _
    $region25: #{tpu_custom_call.1} parent=1 // pred_fallthru
      _
    // Predicated region
    $region26: #{tpu_custom_call.1} parent=1 // pred_check
      _
    $region27: #{tpu_custom_call.1} parent=1 // pred_check_branch
      %26 = sbr.rel (0) target = $region29
    $region28: #{tpu_custom_call.1} parent=1 // pred_region
      _
    $region29: #{tpu_custom_call.1} parent=1 // pred_fallthru
      _
    %v27 = vld [vmem:[%s0] sm:$0xff]
    %v28 = vld [vmem:[%s0 + $0x8] sm:$0xff]
    %v29 = vld [vmem:[%s0 + $0x10] sm:$0xff]
    %v30 = vld [vmem:[%s0 + $0x18] sm:$0xff]
    %v31 = vld [vmem:[%s0 + $0x20] sm:$0xff]
    %v32 = vld [vmem:[%s0 + $0x28] sm:$0xff]
    %v33 = vld [vmem:[%s0 + $0x30] sm:$0xff]
    %v34 = vld [vmem:[%s0 + $0x38] sm:$0xff]
    %v35 = vld [vmem:[%s1] sm:$0xff]
    %v36 = vld [vmem:[%s1 + $0x8] sm:$0xff]
    %v37 = vld [vmem:[%s1 + $0x10] sm:$0xff]
    %v38 = vld [vmem:[%s1 + $0x18] sm:$0xff]
    %v39 = vld [vmem:[%s2] sm:$0x1]
    %v41 = vperm.slane %v39, 0
    %vm43 = vcmask 261120
    %v45 = vsel %vm43, %v27, 0
    %v48 = vsel %vm43, %v28, 0
    %v51 = vsel %vm43, %v29, 0
    %v54 = vsel %vm43, %v30, 0
    %v57 = vsel %vm43, %v31, 0
    %v60 = vsel %vm43, %v32, 0
    %v63 = vsel %vm43, %v33, 0
    %v66 = vsel %vm43, %v34, 0
    %68 = vmatpush.msra.mxu0 0.0
    %69 = vmatpush.msra.mxu0 0.0
    %70 = vmatpush.msra.mxu0 0.0
    %71 = vmatpush.msra.mxu0 0.0
    %72 = vmatpush.msra.mxu0 0.0
    %73 = vmatpush.msra.mxu0 0.0
    %74 = vmatpush.msra.mxu0 0.0
    %75 = vmatpush.msra.mxu0 0.0
    %76 = vmatpush.msra.mxu0 0.0
    %77 = vmatpush.msra.mxu0 0.0
    %78 = vmatpush.msra.mxu0 0.0
    %79 = vmatpush.msra.mxu0 0.0
    %80 = vmatpush.msra.mxu0 %v38
    %81 = vmatpush.msra.mxu0 %v37
    %82 = vmatpush.msra.mxu0 %v36
    %83 = vmatpush.msra.mxu0 %v35
    %84 = vmatmul.f32.gmra.mxu0 %v45
    %v85 = vpop.f32.mrf.mxu0
    %v86 = vadd.f32 %v41, %v85
    %87 = vmatmul.f32.gmra.mxu0 %v48
    %v88 = vpop.f32.mrf.mxu0
    %v89 = vadd.f32 %v41, %v88
    %90 = vmatmul.f32.gmra.mxu0 %v51
    %v91 = vpop.f32.mrf.mxu0
    %v92 = vadd.f32 %v41, %v91
    %93 = vmatmul.f32.gmra.mxu0 %v54
    %v94 = vpop.f32.mrf.mxu0
    %v95 = vadd.f32 %v41, %v94
    %96 = vmatmul.f32.gmra.mxu0 %v57
    %v97 = vpop.f32.mrf.mxu0
    %v98 = vadd.f32 %v41, %v97
    %99 = vmatmul.f32.gmra.mxu0 %v60
    %v100 = vpop.f32.mrf.mxu0
    %v101 = vadd.f32 %v41, %v100
    %102 = vmatmul.f32.gmra.mxu0 %v63
    %v103 = vpop.f32.mrf.mxu0
    %v104 = vadd.f32 %v41, %v103
    %105 = vmatmul.f32.gmra.mxu0 %v66
    %v106 = vpop.f32.mrf.mxu0
    %v107 = vadd.f32 %v41, %v106
    %108 = vdwg.mxu0
    %v109 = vsel %vm43, %v86, 0.0
    %110 = vadd.xlane.f32.xlu0 %v109
    %v111 = vpop.xlane.xlu0 %110
    %v112 = vsel %vm43, %v89, 0.0
    %113 = vadd.xlane.f32.xlu0 %v112
    %v114 = vpop.xlane.xlu0 %113
    %v115 = vsel %vm43, %v92, 0.0
    %116 = vadd.xlane.f32.xlu0 %v115
    %v117 = vpop.xlane.xlu0 %116
    %v118 = vsel %vm43, %v95, 0.0
    %119 = vadd.xlane.f32.xlu0 %v118
    %v120 = vpop.xlane.xlu0 %119
    %v121 = vsel %vm43, %v98, 0.0
    %122 = vadd.xlane.f32.xlu0 %v121
    %v123 = vpop.xlane.xlu0 %122
    %v124 = vsel %vm43, %v101, 0.0
    %125 = vadd.xlane.f32.xlu0 %v124
    %v126 = vpop.xlane.xlu0 %125
    %v127 = vsel %vm43, %v104, 0.0
    %128 = vadd.xlane.f32.xlu0 %v127
    %v129 = vpop.xlane.xlu0 %128
    %v130 = vsel %vm43, %v107, 0.0
    %131 = vadd.xlane.f32.xlu0 %v130
    %v132 = vpop.xlane.xlu0 %131
    %v133 = vrcp.pop 32.0
    %v134 = vmul.f32 32.0, %v133
    %v135 = vsub.f32 1.0, %v134
    %v136 = vmul.f32 %v133, %v135
    %v137 = vadd.f32 %v133, %v136
    %vm138 = vweird.f32 %v133
    %v139 = vsel %vm138, %v133, %v137
    %v140 = vmul.f32 %v111, %v139
    %v141 = vmul.f32 %v114, %v139
    %v142 = vmul.f32 %v117, %v139
    %v143 = vmul.f32 %v120, %v139
    %v144 = vmul.f32 %v123, %v139
    %v145 = vmul.f32 %v126, %v139
    %v146 = vmul.f32 %v129, %v139
    %v147 = vmul.f32 %v132, %v139
    %v148 = vsub.f32 %v86, %v140
    %v149 = vsub.f32 %v89, %v141
    %v150 = vsub.f32 %v92, %v142
    %v151 = vsub.f32 %v95, %v143
    %v152 = vsub.f32 %v98, %v144
    %v153 = vsub.f32 %v101, %v145
    %v154 = vsub.f32 %v104, %v146
    %v155 = vsub.f32 %v107, %v147
    %v156 = vmul.f32 %v148, %v148
    %v157 = vmul.f32 %v149, %v149
    %v158 = vmul.f32 %v150, %v150
    %v159 = vmul.f32 %v151, %v151
    %v160 = vmul.f32 %v152, %v152
    %v161 = vmul.f32 %v153, %v153
    %v162 = vmul.f32 %v154, %v154
    %v163 = vmul.f32 %v155, %v155
    %v164 = vsel %vm43, %v156, 0.0
    %165 = vadd.xlane.f32.xlu0 %v164
    %v166 = vpop.xlane.xlu0 %165
    %v167 = vsel %vm43, %v157, 0.0
    %168 = vadd.xlane.f32.xlu0 %v167
    %v169 = vpop.xlane.xlu0 %168
    %v170 = vsel %vm43, %v158, 0.0
    %171 = vadd.xlane.f32.xlu0 %v170
    %v172 = vpop.xlane.xlu0 %171
    %v173 = vsel %vm43, %v159, 0.0
    %174 = vadd.xlane.f32.xlu0 %v173
    %v175 = vpop.xlane.xlu0 %174
    %v176 = vsel %vm43, %v160, 0.0
    %177 = vadd.xlane.f32.xlu0 %v176
    %v178 = vpop.xlane.xlu0 %177
    %v179 = vsel %vm43, %v161, 0.0
    %180 = vadd.xlane.f32.xlu0 %v179
    %v181 = vpop.xlane.xlu0 %180
    %v182 = vsel %vm43, %v162, 0.0
    %183 = vadd.xlane.f32.xlu0 %v182
    %v184 = vpop.xlane.xlu0 %183
    %v185 = vsel %vm43, %v163, 0.0
    %186 = vadd.xlane.f32.xlu0 %v185
    %v187 = vpop.xlane.xlu0 %186
    %v188 = vmul.f32 %v166, %v139
    %v189 = vmul.f32 %v169, %v139
    %v190 = vmul.f32 %v172, %v139
    %v191 = vmul.f32 %v175, %v139
    %v192 = vmul.f32 %v178, %v139
    %v193 = vmul.f32 %v181, %v139
    %v194 = vmul.f32 %v184, %v139
    %v195 = vmul.f32 %v187, %v139
    %v196 = vadd.f32 %v188, 1e-05
    %v197 = vadd.f32 %v189, 1e-05
    %v198 = vadd.f32 %v190, 1e-05
    %v199 = vadd.f32 %v191, 1e-05
    %v200 = vadd.f32 %v192, 1e-05
    %v201 = vadd.f32 %v193, 1e-05
    %v202 = vadd.f32 %v194, 1e-05
    %v203 = vadd.f32 %v195, 1e-05
    %v204 = vrsqrt.pop %v196
    %v205 = vmul.f32 %v204, %v196
    %v206 = vmul.f32 %v205, %v204
    %v207 = vmul.f32 0.5, %v206
    %v208 = vsub.f32 1.5, %v207
    %v209 = vmul.f32 %v204, %v208
    %vm210 = vweird.f32 %v196
    %vm211 = vweird.f32 %v204
    %vm212 = vmor %vm210, %vm211
    %v213 = vsel %vm212, %v204, %v209
    %v214 = vrsqrt.pop %v197
    %v215 = vmul.f32 %v214, %v197
    %v216 = vmul.f32 %v215, %v214
    %v217 = vmul.f32 0.5, %v216
    %v218 = vsub.f32 1.5, %v217
    %v219 = vmul.f32 %v214, %v218
    %vm220 = vweird.f32 %v197
    %vm221 = vweird.f32 %v214
    %vm222 = vmor %vm220, %vm221
    %v223 = vsel %vm222, %v214, %v219
    %v224 = vrsqrt.pop %v198
    %v225 = vmul.f32 %v224, %v198
    %v226 = vmul.f32 %v225, %v224
    %v227 = vmul.f32 0.5, %v226
    %v228 = vsub.f32 1.5, %v227
    %v229 = vmul.f32 %v224, %v228
    %vm230 = vweird.f32 %v198
    %vm231 = vweird.f32 %v224
    %vm232 = vmor %vm230, %vm231
    %v233 = vsel %vm232, %v224, %v229
    %v234 = vrsqrt.pop %v199
    %v235 = vmul.f32 %v234, %v199
    %v236 = vmul.f32 %v235, %v234
    %v237 = vmul.f32 0.5, %v236
    %v238 = vsub.f32 1.5, %v237
    %v239 = vmul.f32 %v234, %v238
    %vm240 = vweird.f32 %v199
    %vm241 = vweird.f32 %v234
    %vm242 = vmor %vm240, %vm241
    %v243 = vsel %vm242, %v234, %v239
    %v244 = vrsqrt.pop %v200
    %v245 = vmul.f32 %v244, %v200
    %v246 = vmul.f32 %v245, %v244
    %v247 = vmul.f32 0.5, %v246
    %v248 = vsub.f32 1.5, %v247
    %v249 = vmul.f32 %v244, %v248
    %vm250 = vweird.f32 %v200
    %vm251 = vweird.f32 %v244
    %vm252 = vmor %vm250, %vm251
    %v253 = vsel %vm252, %v244, %v249
    %v254 = vrsqrt.pop %v201
    %v255 = vmul.f32 %v254, %v201
    %v256 = vmul.f32 %v255, %v254
    %v257 = vmul.f32 0.5, %v256
    %v258 = vsub.f32 1.5, %v257
    %v259 = vmul.f32 %v254, %v258
    %vm260 = vweird.f32 %v201
    %vm261 = vweird.f32 %v254
    %vm262 = vmor %vm260, %vm261
    %v263 = vsel %vm262, %v254, %v259
    %v264 = vrsqrt.pop %v202
    %v265 = vmul.f32 %v264, %v202
    %v266 = vmul.f32 %v265, %v264
    %v267 = vmul.f32 0.5, %v266
    %v268 = vsub.f32 1.5, %v267
    %v269 = vmul.f32 %v264, %v268
    %vm270 = vweird.f32 %v202
    %vm271 = vweird.f32 %v264
    %vm272 = vmor %vm270, %vm271
    %v273 = vsel %vm272, %v264, %v269
    %v274 = vrsqrt.pop %v203
    %v275 = vmul.f32 %v274, %v203
    %v276 = vmul.f32 %v275, %v274
    %v277 = vmul.f32 0.5, %v276
    %v278 = vsub.f32 1.5, %v277
    %v279 = vmul.f32 %v274, %v278
    %vm280 = vweird.f32 %v203
    %vm281 = vweird.f32 %v274
    %vm282 = vmor %vm280, %vm281
    %v283 = vsel %vm282, %v274, %v279
    %v284 = vmul.f32 %v148, %v213
    %v285 = vmul.f32 %v149, %v223
    %v286 = vmul.f32 %v150, %v233
    %v287 = vmul.f32 %v151, %v243
    %v288 = vmul.f32 %v152, %v253
    %v289 = vmul.f32 %v153, %v263
    %v290 = vmul.f32 %v154, %v273
    %v291 = vmul.f32 %v155, %v283
    %v292 = vld [vmem:[%s3] sm:$0x1]
    %v294 = vperm.slane %v292, 0
    %v296 = vmul.f32 %v284, %v294
    %v297 = vmul.f32 %v285, %v294
    %v298 = vmul.f32 %v286, %v294
    %v299 = vmul.f32 %v287, %v294
    %v300 = vmul.f32 %v288, %v294
    %v301 = vmul.f32 %v289, %v294
    %v302 = vmul.f32 %v290, %v294
    %v303 = vmul.f32 %v291, %v294
    %v304 = vld [vmem:[%s4] sm:$0x1]
    %v306 = vperm.slane %v304, 0
    %v308 = vadd.f32 %v296, %v306
    %v309 = vadd.f32 %v297, %v306
    %v310 = vadd.f32 %v298, %v306
    %v311 = vadd.f32 %v299, %v306
    %v312 = vadd.f32 %v300, %v306
    %v313 = vadd.f32 %v301, %v306
    %v314 = vadd.f32 %v302, %v306
    %v315 = vadd.f32 %v303, %v306
    %v316 = vmul.f32 %v308, 0.5
    %v317 = vmul.f32 %v309, 0.5
    %v318 = vmul.f32 %v310, 0.5
    %v319 = vmul.f32 %v311, 0.5
    %v320 = vmul.f32 %v312, 0.5
    %v321 = vmul.f32 %v313, 0.5
    %v322 = vmul.f32 %v314, 0.5
    %v323 = vmul.f32 %v315, 0.5
    %v324 = vmul.f32 %v308, 0.70710677
    %v325 = vmul.f32 %v309, 0.70710677
    %v326 = vmul.f32 %v310, 0.70710677
    %v327 = vmul.f32 %v311, 0.70710677
    %v328 = vmul.f32 %v312, 0.70710677
    %v329 = vmul.f32 %v313, 0.70710677
    %v330 = vmul.f32 %v314, 0.70710677
    %v331 = vmul.f32 %v315, 0.70710677
    %v332 = vmul.f32 %v324, %v324
    %v333 = vmin.f32 16.0, %v332
    %v334 = vmul.f32 %v333, 2.1237322e-06
    %v335 = vadd.f32 %v334, 0.00028619796
    %v336 = vmul.f32 %v333, %v335
    %v337 = vadd.f32 %v336, 0.0036580483
    %v338 = vmul.f32 %v333, %v337
    %v339 = vadd.f32 %v338, 0.05243302
    %v340 = vmul.f32 %v333, %v339
    %v341 = vadd.f32 %v340, 0.18741608
    %v342 = vmul.f32 %v333, %v341
    %v343 = vadd.f32 %v342, 1.1283791
    %v344 = vmul.f32 %v324, %v343
    %v345 = vmul.f32 %v333, 3.8918573e-05
    %v346 = vadd.f32 %v345, 0.001143296
    %v347 = vmul.f32 %v333, %v346
    %v348 = vadd.f32 %v347, 0.014752088
    %v349 = vmul.f32 %v333, %v348
    %v350 = vadd.f32 %v349, 0.112945676
    %v351 = vmul.f32 %v333, %v350
    %v352 = vadd.f32 %v351, 0.4994258
    %v353 = vmul.f32 %v333, %v352
    %v354 = vadd.f32 %v353, 1.0
    %v355 = vrcp.pop %v354
    %v356 = vmul.f32 %v354, %v355
    %v357 = vsub.f32 1.0, %v356
    %v358 = vmul.f32 %v355, %v357
    %v359 = vadd.f32 %v355, %v358
    %vm360 = vweird.f32 %v354
    %vm361 = vweird.f32 %v355
    %vm362 = vmor %vm360, %vm361
    %v363 = vsel %vm362, %v355, %v359
    %v364 = vand.u32 2147483647, %v354
    %vm365 = vcmp.eq.f32.partialorder %v364, 8.507059e+37
    %v366 = vand.u32 %v354, 2147483648
    %v367 = vor.u32 1.1754944e-38, %v366
    %v368 = vsel %vm365, %v367, %v363
    %v369 = vmul.f32 %v344, %v368
    %v370 = vmin.f32 %v369, 1.0
    %v371 = vmax.f32 %v370, -1.0
    %v372 = vmul.f32 %v325, %v325
    %v373 = vmin.f32 16.0, %v372
    %v374 = vmul.f32 %v373, 2.1237322e-06
    %v375 = vadd.f32 %v374, 0.00028619796
    %v376 = vmul.f32 %v373, %v375
    %v377 = vadd.f32 %v376, 0.0036580483
    %v378 = vmul.f32 %v373, %v377
    %v379 = vadd.f32 %v378, 0.05243302
    %v380 = vmul.f32 %v373, %v379
    %v381 = vadd.f32 %v380, 0.18741608
    %v382 = vmul.f32 %v373, %v381
    %v383 = vadd.f32 %v382, 1.1283791
    %v384 = vmul.f32 %v325, %v383
    %v385 = vmul.f32 %v373, 3.8918573e-05
    %v386 = vadd.f32 %v385, 0.001143296
    %v387 = vmul.f32 %v373, %v386
    %v388 = vadd.f32 %v387, 0.014752088
    %v389 = vmul.f32 %v373, %v388
    %v390 = vadd.f32 %v389, 0.112945676
    %v391 = vmul.f32 %v373, %v390
    %v392 = vadd.f32 %v391, 0.4994258
    %v393 = vmul.f32 %v373, %v392
    %v394 = vadd.f32 %v393, 1.0
    %v395 = vrcp.pop %v394
    %v396 = vmul.f32 %v394, %v395
    %v397 = vsub.f32 1.0, %v396
    %v398 = vmul.f32 %v395, %v397
    %v399 = vadd.f32 %v395, %v398
    %vm400 = vweird.f32 %v394
    %vm401 = vweird.f32 %v395
    %vm402 = vmor %vm400, %vm401
    %v403 = vsel %vm402, %v395, %v399
    %v404 = vand.u32 2147483647, %v394
    %vm405 = vcmp.eq.f32.partialorder %v404, 8.507059e+37
    %v406 = vand.u32 %v394, 2147483648
    %v407 = vor.u32 1.1754944e-38, %v406
    %v408 = vsel %vm405, %v407, %v403
    %v409 = vmul.f32 %v384, %v408
    %v410 = vmin.f32 %v409, 1.0
    %v411 = vmax.f32 %v410, -1.0
    %v412 = vmul.f32 %v326, %v326
    %v413 = vmin.f32 16.0, %v412
    %v414 = vmul.f32 %v413, 2.1237322e-06
    %v415 = vadd.f32 %v414, 0.00028619796
    %v416 = vmul.f32 %v413, %v415
    %v417 = vadd.f32 %v416, 0.0036580483
    %v418 = vmul.f32 %v413, %v417
    %v419 = vadd.f32 %v418, 0.05243302
    %v420 = vmul.f32 %v413, %v419
    %v421 = vadd.f32 %v420, 0.18741608
    %v422 = vmul.f32 %v413, %v421
    %v423 = vadd.f32 %v422, 1.1283791
    %v424 = vmul.f32 %v326, %v423
    %v425 = vmul.f32 %v413, 3.8918573e-05
    %v426 = vadd.f32 %v425, 0.001143296
    %v427 = vmul.f32 %v413, %v426
    %v428 = vadd.f32 %v427, 0.014752088
    %v429 = vmul.f32 %v413, %v428
    %v430 = vadd.f32 %v429, 0.112945676
    %v431 = vmul.f32 %v413, %v430
    %v432 = vadd.f32 %v431, 0.4994258
    %v433 = vmul.f32 %v413, %v432
    %v434 = vadd.f32 %v433, 1.0
    %v435 = vrcp.pop %v434
    %v436 = vmul.f32 %v434, %v435
    %v437 = vsub.f32 1.0, %v436
    %v438 = vmul.f32 %v435, %v437
    %v439 = vadd.f32 %v435, %v438
    %vm440 = vweird.f32 %v434
    %vm441 = vweird.f32 %v435
    %vm442 = vmor %vm440, %vm441
    %v443 = vsel %vm442, %v435, %v439
    %v444 = vand.u32 2147483647, %v434
    %vm445 = vcmp.eq.f32.partialorder %v444, 8.507059e+37
    %v446 = vand.u32 %v434, 2147483648
    %v447 = vor.u32 1.1754944e-38, %v446
    %v448 = vsel %vm445, %v447, %v443
    %v449 = vmul.f32 %v424, %v448
    %v450 = vmin.f32 %v449, 1.0
    %v451 = vmax.f32 %v450, -1.0
    %v452 = vmul.f32 %v327, %v327
    %v453 = vmin.f32 16.0, %v452
    %v454 = vmul.f32 %v453, 2.1237322e-06
    %v455 = vadd.f32 %v454, 0.00028619796
    %v456 = vmul.f32 %v453, %v455
    %v457 = vadd.f32 %v456, 0.0036580483
    %v458 = vmul.f32 %v453, %v457
    %v459 = vadd.f32 %v458, 0.05243302
    %v460 = vmul.f32 %v453, %v459
    %v461 = vadd.f32 %v460, 0.18741608
    %v462 = vmul.f32 %v453, %v461
    %v463 = vadd.f32 %v462, 1.1283791
    %v464 = vmul.f32 %v327, %v463
    %v465 = vmul.f32 %v453, 3.8918573e-05
    %v466 = vadd.f32 %v465, 0.001143296
    %v467 = vmul.f32 %v453, %v466
    %v468 = vadd.f32 %v467, 0.014752088
    %v469 = vmul.f32 %v453, %v468
    %v470 = vadd.f32 %v469, 0.112945676
    %v471 = vmul.f32 %v453, %v470
    %v472 = vadd.f32 %v471, 0.4994258
    %v473 = vmul.f32 %v453, %v472
    %v474 = vadd.f32 %v473, 1.0
    %v475 = vrcp.pop %v474
    %v476 = vmul.f32 %v474, %v475
    %v477 = vsub.f32 1.0, %v476
    %v478 = vmul.f32 %v475, %v477
    %v479 = vadd.f32 %v475, %v478
    %vm480 = vweird.f32 %v474
    %vm481 = vweird.f32 %v475
    %vm482 = vmor %vm480, %vm481
    %v483 = vsel %vm482, %v475, %v479
    %v484 = vand.u32 2147483647, %v474
    %vm485 = vcmp.eq.f32.partialorder %v484, 8.507059e+37
    %v486 = vand.u32 %v474, 2147483648
    %v487 = vor.u32 1.1754944e-38, %v486
    %v488 = vsel %vm485, %v487, %v483
    %v489 = vmul.f32 %v464, %v488
    %v490 = vmin.f32 %v489, 1.0
    %v491 = vmax.f32 %v490, -1.0
    %v492 = vmul.f32 %v328, %v328
    %v493 = vmin.f32 16.0, %v492
    %v494 = vmul.f32 %v493, 2.1237322e-06
    %v495 = vadd.f32 %v494, 0.00028619796
    %v496 = vmul.f32 %v493, %v495
    %v497 = vadd.f32 %v496, 0.0036580483
    %v498 = vmul.f32 %v493, %v497
    %v499 = vadd.f32 %v498, 0.05243302
    %v500 = vmul.f32 %v493, %v499
    %v501 = vadd.f32 %v500, 0.18741608
    %v502 = vmul.f32 %v493, %v501
    %v503 = vadd.f32 %v502, 1.1283791
    %v504 = vmul.f32 %v328, %v503
    %v505 = vmul.f32 %v493, 3.8918573e-05
    %v506 = vadd.f32 %v505, 0.001143296
    %v507 = vmul.f32 %v493, %v506
    %v508 = vadd.f32 %v507, 0.014752088
    %v509 = vmul.f32 %v493, %v508
    %v510 = vadd.f32 %v509, 0.112945676
    %v511 = vmul.f32 %v493, %v510
    %v512 = vadd.f32 %v511, 0.4994258
    %v513 = vmul.f32 %v493, %v512
    %v514 = vadd.f32 %v513, 1.0
    %v515 = vrcp.pop %v514
    %v516 = vmul.f32 %v514, %v515
    %v517 = vsub.f32 1.0, %v516
    %v518 = vmul.f32 %v515, %v517
    %v519 = vadd.f32 %v515, %v518
    %vm520 = vweird.f32 %v514
    %vm521 = vweird.f32 %v515
    %vm522 = vmor %vm520, %vm521
    %v523 = vsel %vm522, %v515, %v519
    %v524 = vand.u32 2147483647, %v514
    %vm525 = vcmp.eq.f32.partialorder %v524, 8.507059e+37
    %v526 = vand.u32 %v514, 2147483648
    %v527 = vor.u32 1.1754944e-38, %v526
    %v528 = vsel %vm525, %v527, %v523
    %v529 = vmul.f32 %v504, %v528
    %v530 = vmin.f32 %v529, 1.0
    %v531 = vmax.f32 %v530, -1.0
    %v532 = vmul.f32 %v329, %v329
    %v533 = vmin.f32 16.0, %v532
    %v534 = vmul.f32 %v533, 2.1237322e-06
    %v535 = vadd.f32 %v534, 0.00028619796
    %v536 = vmul.f32 %v533, %v535
    %v537 = vadd.f32 %v536, 0.0036580483
    %v538 = vmul.f32 %v533, %v537
    %v539 = vadd.f32 %v538, 0.05243302
    %v540 = vmul.f32 %v533, %v539
    %v541 = vadd.f32 %v540, 0.18741608
    %v542 = vmul.f32 %v533, %v541
    %v543 = vadd.f32 %v542, 1.1283791
    %v544 = vmul.f32 %v329, %v543
    %v545 = vmul.f32 %v533, 3.8918573e-05
    %v546 = vadd.f32 %v545, 0.001143296
    %v547 = vmul.f32 %v533, %v546
    %v548 = vadd.f32 %v547, 0.014752088
    %v549 = vmul.f32 %v533, %v548
    %v550 = vadd.f32 %v549, 0.112945676
    %v551 = vmul.f32 %v533, %v550
    %v552 = vadd.f32 %v551, 0.4994258
    %v553 = vmul.f32 %v533, %v552
    %v554 = vadd.f32 %v553, 1.0
    %v555 = vrcp.pop %v554
    %v556 = vmul.f32 %v554, %v555
    %v557 = vsub.f32 1.0, %v556
    %v558 = vmul.f32 %v555, %v557
    %v559 = vadd.f32 %v555, %v558
    %vm560 = vweird.f32 %v554
    %vm561 = vweird.f32 %v555
    %vm562 = vmor %vm560, %vm561
    %v563 = vsel %vm562, %v555, %v559
    %v564 = vand.u32 2147483647, %v554
    %vm565 = vcmp.eq.f32.partialorder %v564, 8.507059e+37
    %v566 = vand.u32 %v554, 2147483648
    %v567 = vor.u32 1.1754944e-38, %v566
    %v568 = vsel %vm565, %v567, %v563
    %v569 = vmul.f32 %v544, %v568
    %v570 = vmin.f32 %v569, 1.0
    %v571 = vmax.f32 %v570, -1.0
    %v572 = vmul.f32 %v330, %v330
    %v573 = vmin.f32 16.0, %v572
    %v574 = vmul.f32 %v573, 2.1237322e-06
    %v575 = vadd.f32 %v574, 0.00028619796
    %v576 = vmul.f32 %v573, %v575
    %v577 = vadd.f32 %v576, 0.0036580483
    %v578 = vmul.f32 %v573, %v577
    %v579 = vadd.f32 %v578, 0.05243302
    %v580 = vmul.f32 %v573, %v579
    %v581 = vadd.f32 %v580, 0.18741608
    %v582 = vmul.f32 %v573, %v581
    %v583 = vadd.f32 %v582, 1.1283791
    %v584 = vmul.f32 %v330, %v583
    %v585 = vmul.f32 %v573, 3.8918573e-05
    %v586 = vadd.f32 %v585, 0.001143296
    %v587 = vmul.f32 %v573, %v586
    %v588 = vadd.f32 %v587, 0.014752088
    %v589 = vmul.f32 %v573, %v588
    %v590 = vadd.f32 %v589, 0.112945676
    %v591 = vmul.f32 %v573, %v590
    %v592 = vadd.f32 %v591, 0.4994258
    %v593 = vmul.f32 %v573, %v592
    %v594 = vadd.f32 %v593, 1.0
    %v595 = vrcp.pop %v594
    %v596 = vmul.f32 %v594, %v595
    %v597 = vsub.f32 1.0, %v596
    %v598 = vmul.f32 %v595, %v597
    %v599 = vadd.f32 %v595, %v598
    %vm600 = vweird.f32 %v594
    %vm601 = vweird.f32 %v595
    %vm602 = vmor %vm600, %vm601
    %v603 = vsel %vm602, %v595, %v599
    %v604 = vand.u32 2147483647, %v594
    %vm605 = vcmp.eq.f32.partialorder %v604, 8.507059e+37
    %v606 = vand.u32 %v594, 2147483648
    %v607 = vor.u32 1.1754944e-38, %v606
    %v608 = vsel %vm605, %v607, %v603
    %v609 = vmul.f32 %v584, %v608
    %v610 = vmin.f32 %v609, 1.0
    %v611 = vmax.f32 %v610, -1.0
    %v612 = vmul.f32 %v331, %v331
    %v613 = vmin.f32 16.0, %v612
    %v614 = vmul.f32 %v613, 2.1237322e-06
    %v615 = vadd.f32 %v614, 0.00028619796
    %v616 = vmul.f32 %v613, %v615
    %v617 = vadd.f32 %v616, 0.0036580483
    %v618 = vmul.f32 %v613, %v617
    %v619 = vadd.f32 %v618, 0.05243302
    %v620 = vmul.f32 %v613, %v619
    %v621 = vadd.f32 %v620, 0.18741608
    %v622 = vmul.f32 %v613, %v621
    %v623 = vadd.f32 %v622, 1.1283791
    %v624 = vmul.f32 %v331, %v623
    %v625 = vmul.f32 %v613, 3.8918573e-05
    %v626 = vadd.f32 %v625, 0.001143296
    %v627 = vmul.f32 %v613, %v626
    %v628 = vadd.f32 %v627, 0.014752088
    %v629 = vmul.f32 %v613, %v628
    %v630 = vadd.f32 %v629, 0.112945676
    %v631 = vmul.f32 %v613, %v630
    %v632 = vadd.f32 %v631, 0.4994258
    %v633 = vmul.f32 %v613, %v632
    %v634 = vadd.f32 %v633, 1.0
    %v635 = vrcp.pop %v634
    %v636 = vmul.f32 %v634, %v635
    %v637 = vsub.f32 1.0, %v636
    %v638 = vmul.f32 %v635, %v637
    %v639 = vadd.f32 %v635, %v638
    %vm640 = vweird.f32 %v634
    %vm641 = vweird.f32 %v635
    %vm642 = vmor %vm640, %vm641
    %v643 = vsel %vm642, %v635, %v639
    %v644 = vand.u32 2147483647, %v634
    %vm645 = vcmp.eq.f32.partialorder %v644, 8.507059e+37
    %v646 = vand.u32 %v634, 2147483648
    %v647 = vor.u32 1.1754944e-38, %v646
    %v648 = vsel %vm645, %v647, %v643
    %v649 = vmul.f32 %v624, %v648
    %v650 = vmin.f32 %v649, 1.0
    %v651 = vmax.f32 %v650, -1.0
    %v652 = vadd.f32 %v371, 1.0
    %v653 = vadd.f32 %v411, 1.0
    %v654 = vadd.f32 %v451, 1.0
    %v655 = vadd.f32 %v491, 1.0
    %v656 = vadd.f32 %v531, 1.0
    %v657 = vadd.f32 %v571, 1.0
    %v658 = vadd.f32 %v611, 1.0
    %v659 = vadd.f32 %v651, 1.0
    %v660 = vmul.f32 %v316, %v652
    %v661 = vmul.f32 %v317, %v653
    %v662 = vmul.f32 %v318, %v654
    %v663 = vmul.f32 %v319, %v655
    %v664 = vmul.f32 %v320, %v656
    %v665 = vmul.f32 %v321, %v657
    %v666 = vmul.f32 %v322, %v658
    %v667 = vmul.f32 %v323, %v659
    %v668 = vld [vmem:[%s5] sm:$0xff]
    %v669 = vld [vmem:[%s5 + $0x8] sm:$0xff]
    %v670 = vld [vmem:[%s5 + $0x10] sm:$0xff]
    %v671 = vld [vmem:[%s5 + $0x18] sm:$0xff]
    %v672 = vld [vmem:[%s6] sm:$0x1]
    %v674 = vperm.slane %v672, 0
    %v677 = vsel %vm43, %v660, 0
    %v680 = vsel %vm43, %v661, 0
    %v683 = vsel %vm43, %v662, 0
    %v686 = vsel %vm43, %v663, 0
    %v689 = vsel %vm43, %v664, 0
    %v692 = vsel %vm43, %v665, 0
    %v695 = vsel %vm43, %v666, 0
    %v698 = vsel %vm43, %v667, 0
    %700 = vmatpush.msra.mxu0 0.0
    %701 = vmatpush.msra.mxu0 0.0
    %702 = vmatpush.msra.mxu0 0.0
    %703 = vmatpush.msra.mxu0 0.0
    %704 = vmatpush.msra.mxu0 0.0
    %705 = vmatpush.msra.mxu0 0.0
    %706 = vmatpush.msra.mxu0 0.0
    %707 = vmatpush.msra.mxu0 0.0
    %708 = vmatpush.msra.mxu0 0.0
    %709 = vmatpush.msra.mxu0 0.0
    %710 = vmatpush.msra.mxu0 0.0
    %711 = vmatpush.msra.mxu0 0.0
    %712 = vmatpush.msra.mxu0 %v671
    %713 = vmatpush.msra.mxu0 %v670
    %714 = vmatpush.msra.mxu0 %v669
    %715 = vmatpush.msra.mxu0 %v668
    %716 = vmatmul.f32.gmra.mxu0 %v677
    %v717 = vpop.f32.mrf.mxu0
    %v718 = vadd.f32 %v674, %v717
    %719 = vmatmul.f32.gmra.mxu0 %v680
    %v720 = vpop.f32.mrf.mxu0
    %v721 = vadd.f32 %v674, %v720
    %722 = vmatmul.f32.gmra.mxu0 %v683
    %v723 = vpop.f32.mrf.mxu0
    %v724 = vadd.f32 %v674, %v723
    %725 = vmatmul.f32.gmra.mxu0 %v686
    %v726 = vpop.f32.mrf.mxu0
    %v727 = vadd.f32 %v674, %v726
    %728 = vmatmul.f32.gmra.mxu0 %v689
    %v729 = vpop.f32.mrf.mxu0
    %v730 = vadd.f32 %v674, %v729
    %731 = vmatmul.f32.gmra.mxu0 %v692
    %v732 = vpop.f32.mrf.mxu0
    %v733 = vadd.f32 %v674, %v732
    %734 = vmatmul.f32.gmra.mxu0 %v695
    %v735 = vpop.f32.mrf.mxu0
    %v736 = vadd.f32 %v674, %v735
    %737 = vmatmul.f32.gmra.mxu0 %v698
    %v738 = vpop.f32.mrf.mxu0
    %v739 = vadd.f32 %v674, %v738
    %740 = vdwg.mxu0
    %741 = vst [vmem:[#allocation2] sm:$0xff] %v718
    %742 = vst [vmem:[#allocation2 + $0x8] sm:$0xff] %v721
    %743 = vst [vmem:[#allocation2 + $0x10] sm:$0xff] %v724
    %744 = vst [vmem:[#allocation2 + $0x18] sm:$0xff] %v727
    %745 = vst [vmem:[#allocation2 + $0x20] sm:$0xff] %v730
    %746 = vst [vmem:[#allocation2 + $0x28] sm:$0xff] %v733
    %747 = vst [vmem:[#allocation2 + $0x30] sm:$0xff] %v736
    %748 = vst [vmem:[#allocation2 + $0x38] sm:$0xff] %v739
    // Predicated region
    $region30: #{tpu_custom_call.1} parent=1 // pred_check
      _
    $region31: #{tpu_custom_call.1} parent=1 // pred_check_branch
      %750 = sbr.rel (0) target = $region33
    $region32: #{tpu_custom_call.1} parent=1 // pred_region
      %752 = vsyncadd [#allocation3], 0
      %s753 = sshll.u32 [#allocation2], 4
      %s754 = int_to_ptr.vmem [resolvable:$true] %s753
      %s755 = sshll.u32 %s7, 4
      %s756 = int_to_ptr.hbm [resolvable:$true] %s755
      %761 = dma.vmem_to_hbm [thread:$0]  %s754, 1024, %s756, [#allocation3], 128, 128, 8
    $region33: #{tpu_custom_call.1} parent=1 // pred_fallthru
      _
    // Predicated region
    $region34: #{tpu_custom_call.1} parent=1 // pred_check
      _
    $region35: #{tpu_custom_call.1} parent=1 // pred_check_branch
      %763 = sbr.rel (0) target = $region37
    $region36: #{tpu_custom_call.1} parent=1 // pred_region
      %765 = dma.done [#allocation3], 1024
    $region37: #{tpu_custom_call.1} parent=1 // pred_fallthru
      _
    %766 = vsyncpa [#allocation3], 1

</llo_original>
